<compile_context>
chip_gen: v7x
topology: tpu7x:2x2x1
jax: 0.10.0
libtpu: 0.0.40
codegen_flags: <defaults>
</compile_context>

<pallas_src>
import functools

import jax
import jax.numpy as jnp
from jax.experimental import pallas as pl
from jax.experimental.pallas import tpu as pltpu


def attn_agg_kernel(x_ref, w_ref, b_ref, o_ref, *, use_bf16_matmul=False):
    # x_ref: (TB, N, D)   a tile of batch elements
    # w_ref: (O*D, D)     linear weight (PyTorch layout: out_features x in_features)
    # b_ref: (1, O*D)     linear bias
    # o_ref: (TB, O*D)    aggregated output tile (lane-dense)
    TB, N, D = x_ref.shape
    OD = o_ref.shape[-1]
    O = OD // D

    x = x_ref[...]                                      # (TB, N, D)
    x_flat = x.reshape(TB * N, D)                       # one big matmul M-dim

    if use_bf16_matmul:
        lhs = x_flat.astype(jnp.bfloat16)
        rhs = w_ref[...].astype(jnp.bfloat16)
    else:
        lhs = x_flat.astype(jnp.float32)
        rhs = w_ref[...].astype(jnp.float32)

    # fc: logits[m, e] = sum_d x[m, d] * W[e, d] + bias[e]   -> (TB*N, O*D)  (MXU)
    logits = jax.lax.dot_general(
        lhs, rhs,
        dimension_numbers=(((1,), (1,)), ((), ())),
        preferred_element_type=jnp.float32,
    )
    logits = logits + b_ref[...].astype(jnp.float32)    # broadcast (1, O*D)

    # softmax over N, independently per (o, d) column; keep flat (TB, N, O*D).
    lg = logits.reshape(TB, N, OD)
    m = jnp.max(lg, axis=1, keepdims=True)              # (TB, 1, O*D)
    e = jnp.exp(lg - m)                                 # (TB, N, O*D)
    s = jnp.sum(e, axis=1)                              # (TB, O*D)

    # Weighted sum over N with the UNnormalized weights, normalize once at end:
    #   out[tb, o*D+d] = (sum_n x[tb,n,d] * e[tb,n,o*D+d]) / s[tb, o*D+d]
    x_t = jnp.tile(x.astype(jnp.float32), (1, 1, O))    # (TB, N, O*D); no-op when O==1
    num = jnp.sum(x_t * e, axis=1)                      # (TB, O*D)
    out = num * pl.reciprocal(s, approx=True)           # EUP reciprocal

    o_ref[...] = out.astype(o_ref.dtype)


def attentional_aggregation(x, W, bias, out_ele_num=1, *, batch_tile=64,
                            use_bf16_matmul=False):
    """x: (B, N, D); W: (out_ele_num*D, D); bias: (out_ele_num*D,)."""
    B, N, D = x.shape
    O = out_ele_num

    # Batch tiling: process TB batch elements per grid step.
    TB = min(batch_tile, B)
    B_pad = pl.cdiv(B, TB) * TB
    x_p = x if B_pad == B else jnp.pad(x, ((0, B_pad - B), (0, 0), (0, 0)))
    bias2 = bias.reshape(1, O * D)

    kernel = functools.partial(attn_agg_kernel, use_bf16_matmul=use_bf16_matmul)

    # NOTE: for very large TB (512+ rows) raise vmem_limit_bytes in
    # pltpu.CompilerParams instead of shrinking the tile (scoped-VMEM default
    # is 16/32 MiB on v5e/v6e-v7x); unnecessary at these sizes.
    out = pl.pallas_call(
        kernel,
        out_shape=jax.ShapeDtypeStruct((B_pad, O * D), x.dtype),
        grid=(B_pad // TB,),
        in_specs=[
            pl.BlockSpec((TB, N, D), lambda b: (b, 0, 0)),
            pl.BlockSpec((O * D, D), lambda b: (0, 0)),   # resident across steps
            pl.BlockSpec((1, O * D), lambda b: (0, 0)),   # resident across steps
        ],
        out_specs=pl.BlockSpec((TB, O * D), lambda b: (b, 0)),
        compiler_params=pltpu.CompilerParams(dimension_semantics=("parallel",)),
    )(x_p, W, bias2)

    out = out[:B].reshape(B, O, D)
    return jnp.squeeze(out)   # matches torch.squeeze on (B, O, D)


def _reference(x, W, bias, out_ele_num=1):
    B, N, D = x.shape
    O = out_ele_num
    logits = x.reshape(-1, D) @ W.T + bias
    w = jax.nn.softmax(logits.reshape(B, N, O, D), axis=1)
    out = jnp.sum(x[:, :, None, :] * w, axis=1)
    return jnp.squeeze(out)


if __name__ == "__main__":
    B, N, D = 2, 8, 32          # batch, in_ele_num, dim
    OUT_ELE_NUM = 1

    key = jax.random.PRNGKey(0)
    kx, kw, kb = jax.random.split(key, 3)
    x = jax.random.normal(kx, (B, N, D), dtype=jnp.float32)
    # Deterministic synthetic nn.Linear(dim, out_ele_num*dim) parameters.
    bound = 1.0 / jnp.sqrt(D)
    W = jax.random.uniform(kw, (OUT_ELE_NUM * D, D), jnp.float32, -bound, bound)
    bias = jax.random.uniform(kb, (OUT_ELE_NUM * D,), jnp.float32, -bound, bound)

    out = attentional_aggregation(x, W, bias, OUT_ELE_NUM)
    out = jax.block_until_ready(out)

    ref = _reference(x, W, bias, OUT_ELE_NUM)
    assert out.shape == ref.shape, (out.shape, ref.shape)
    # approx reciprocal (EUP) -> slightly looser tolerance than exact divide.
    assert jnp.allclose(out, ref, atol=2e-3, rtol=2e-3), "mismatch vs reference"
    print("KERNEL_OK")
</pallas_src>

<mosaic_0001>
module attributes {stable_mosaic.version = 11 : i64} {
  func.func @attn_agg_kernel(%arg0: i32, %arg1: memref<2x8x32xf32, #tpu.memory_space<vmem>>, %arg2: memref<32x32xf32, #tpu.memory_space<vmem>>, %arg3: memref<1x32xf32, #tpu.memory_space<vmem>>, %arg4: memref<2x32xf32, #tpu.memory_space<vmem>>) attributes {dimension_semantics = [#tpu.dimension_semantics<parallel>], iteration_bounds = array<i64: 1>, scalar_prefetch = 0 : i64, scratch_operands = 0 : i64, tpu.core_type = #tpu.core_type<tc>, window_params = [{transform_indices = @transform_0, window_bounds = array<i64: 2, 8, 32>}, {pipeline_mode = #tpu.pipeline_mode<synchronous>, transform_indices = @transform_1, window_bounds = array<i64: 32, 32>}, {pipeline_mode = #tpu.pipeline_mode<synchronous>, transform_indices = @transform_2, window_bounds = array<i64: 1, 32>}, {transform_indices = @transform_3, window_bounds = array<i64: 2, 32>}]} {
    %c0 = arith.constant 0 : index
    %c0_0 = arith.constant 0 : index
    %c0_1 = arith.constant 0 : index
    %0 = vector.load %arg1[%c0, %c0_0, %c0_1] : memref<2x8x32xf32, #tpu.memory_space<vmem>>, vector<2x8x32xf32>
    %1 = vector.shape_cast %0 : vector<2x8x32xf32> to vector<16x32xf32>
    %c0_2 = arith.constant 0 : index
    %c0_3 = arith.constant 0 : index
    %2 = vector.load %arg2[%c0_2, %c0_3] : memref<32x32xf32, #tpu.memory_space<vmem>>, vector<32x32xf32>
    %cst = arith.constant dense<0.000000e+00> : vector<16x32xf32>
    %3 = tpu.matmul %1, %2, %cst {dimension_numbers = #tpu.dot_dimension_numbers<[1], [1], [0], [0], [0, 0, 1, 0], [], []>} : vector<16x32xf32>, vector<32x32xf32>, vector<16x32xf32> -> vector<16x32xf32>
    %c0_4 = arith.constant 0 : index
    %c0_5 = arith.constant 0 : index
    %4 = vector.load %arg3[%c0_4, %c0_5] : memref<1x32xf32, #tpu.memory_space<vmem>>, vector<1x32xf32>
    %5 = vector.broadcast %4 : vector<1x32xf32> to vector<16x32xf32>
    %6 = arith.addf %3, %5 : vector<16x32xf32>
    %7 = vector.shape_cast %6 : vector<16x32xf32> to vector<2x8x32xf32>
    %cst_6 = arith.constant dense<0xFF800000> : vector<2x32xf32>
    %8 = vector.multi_reduction <maximumf>, %7, %cst_6 [1] : vector<2x8x32xf32> to vector<2x32xf32>
    %9 = vector.shape_cast %8 : vector<2x32xf32> to vector<2x1x32xf32>
    %10 = vector.broadcast %9 : vector<2x1x32xf32> to vector<2x8x32xf32>
    %11 = arith.subf %7, %10 : vector<2x8x32xf32>
    %12 = math.exp %11 : vector<2x8x32xf32>
    %cst_7 = arith.constant dense<0.000000e+00> : vector<2x32xf32>
    %13 = vector.multi_reduction <add>, %12, %cst_7 [1] : vector<2x8x32xf32> to vector<2x32xf32>
    %14 = arith.mulf %0, %12 : vector<2x8x32xf32>
    %cst_8 = arith.constant dense<0.000000e+00> : vector<2x32xf32>
    %15 = vector.multi_reduction <add>, %14, %cst_8 [1] : vector<2x8x32xf32> to vector<2x32xf32>
    %16 = tpu.reciprocal %13 {approx = true} : vector<2x32xf32> -> vector<2x32xf32>
    %17 = arith.mulf %15, %16 : vector<2x32xf32>
    %c0_9 = arith.constant 0 : index
    %c0_10 = arith.constant 0 : index
    %18 = vector.load %arg4[%c0_9, %c0_10] : memref<2x32xf32, #tpu.memory_space<vmem>>, vector<2x32xf32>
    tpu.vector_store %arg4[%c0_9, %c0_10], %17 {strides = array<i32>} : memref<2x32xf32, #tpu.memory_space<vmem>>, vector<2x32xf32>,
    return
  }
  func.func @transform_0(%arg0: i32) -> (i32, i32, i32) {
    %c0_i32 = arith.constant 0 : i32
    %c0_i32_0 = arith.constant 0 : i32
    %c0_i32_1 = arith.constant 0 : i32
    return %arg0, %c0_i32, %c0_i32_0 : i32, i32, i32
  }
  func.func @transform_1(%arg0: i32) -> (i32, i32) {
    %c0_i32 = arith.constant 0 : i32
    %c0_i32_0 = arith.constant 0 : i32
    %c0_i32_1 = arith.constant 0 : i32
    return %c0_i32, %c0_i32_0 : i32, i32
  }
  func.func @transform_2(%arg0: i32) -> (i32, i32) {
    %c0_i32 = arith.constant 0 : i32
    %c0_i32_0 = arith.constant 0 : i32
    %c0_i32_1 = arith.constant 0 : i32
    return %c0_i32, %c0_i32_0 : i32, i32
  }
  func.func @transform_3(%arg0: i32) -> (i32, i32) {
    %c0_i32 = arith.constant 0 : i32
    %c0_i32_0 = arith.constant 0 : i32
    return %arg0, %c0_i32 : i32, i32
  }
}

</mosaic_0001>

<llo_original>
// kernel: tpu_custom_call.1
$region0: #{tpu_custom_call.1}
  #allocation0 [shape = 'u32[]', space=smem, size = 0x4, offset = 0x4, fixed_abs, tag = 'smem constant byte address 0x4 - core index']
  #allocation1 [shape = 'u32[144,128]{1,0:T(1,128)}', space=vmem, size = 0x12000, scoped, tag = 'internal scratch']
  %s0 = inlined_call_operand.hbm [shape: f32[2,8,32], index: 0, kind: input, shape index: {}]
  %s1 = inlined_call_operand.hbm [shape: f32[32,32], index: 1, kind: input, shape index: {}]
  %s2 = inlined_call_operand.vmem [shape: f32[1,32], index: 2, kind: input, shape index: {}]
  %s3 = inlined_call_operand.hbm [shape: f32[2,32], index: 3, kind: output, shape index: {}]
  %s4 = sld [smem:[#allocation0]]
  $region30: #{tpu_custom_call.1} parent=0
    _
  %s6 = ssub.s32 1, %s4
  %s7 = scalar_select 0, %s6, %s4
  $region1: #{tpu_custom_call.1} parent=0
    #allocation2 [shape = 'u8[8192]{0}', space=vmem, size = 0x2000, scoped, tag = 'input window, operand 0, single buffered']
    #allocation3 [shape = 's32[1]{0}', space=sflag, size = 0x4, scoped, tag = 'scoped memory for tpu_custom_call.1']
    #allocation4 [shape = 's32[1]{0}', space=sflag, size = 0x4, scoped, tag = 'scoped memory for tpu_custom_call.1']
    #allocation5 [shape = 'u8[16384]{0}', space=vmem, size = 0x4000, scoped, tag = 'input window, operand 1, single buffered']
    #allocation6 [shape = 's32[1]{0}', space=sflag, size = 0x4, scoped, tag = 'scoped memory for tpu_custom_call.1']
    #allocation7 [shape = 'u8[1024]{0}', space=vmem, size = 0x400, scoped, tag = 'output window, operand 0, single buffered']
    %8 = vsyncpa [#allocation3], 0
    %9 = vsyncpa [#allocation6], 0
    %10 = vsyncpa [#allocation4], 0
    // Predicated region
    $region2: #{tpu_custom_call.1} parent=1 // pred_check
      _
    $region3: #{tpu_custom_call.1} parent=1 // pred_check_branch
      %12 = sbr.rel (0) target = $region5
    $region4: #{tpu_custom_call.1} parent=1 // pred_region
      %s14 = ssub.s32 256, 256
      %15 = vsyncadd [#allocation3], %s14
      %s16 = sshll.u32 [#allocation2], 4
      %s17 = int_to_ptr.vmem [resolvable:$true] %s16
      %22 = dma.hbm_to_vmem [thread:$0]  %s0, 256, %s17, [#allocation3], 128, 128, 8
    $region5: #{tpu_custom_call.1} parent=1 // pred_fallthru
      _
    // Predicated region
    $region6: #{tpu_custom_call.1} parent=1 // pred_check
      _
    $region7: #{tpu_custom_call.1} parent=1 // pred_check_branch
      %24 = sbr.rel (0) target = $region9
    $region8: #{tpu_custom_call.1} parent=1 // pred_region
      %s26 = ssub.s32 512, 512
      %27 = vsyncadd [#allocation6], %s26
      %s28 = sshll.u32 [#allocation5], 4
      %s29 = int_to_ptr.vmem [resolvable:$true] %s28
      %34 = dma.hbm_to_vmem [thread:$0]  %s1, 512, %s29, [#allocation6], 128, 128, 8
    $region9: #{tpu_custom_call.1} parent=1 // pred_fallthru
      _
    // Predicated region
    $region10: #{tpu_custom_call.1} parent=1 // pred_check
      _
    $region11: #{tpu_custom_call.1} parent=1 // pred_check_branch
      %36 = sbr.rel (0) target = $region13
    $region12: #{tpu_custom_call.1} parent=1 // pred_region
      _
    $region13: #{tpu_custom_call.1} parent=1 // pred_fallthru
      _
    // Predicated region
    $region14: #{tpu_custom_call.1} parent=1 // pred_check
      _
    $region15: #{tpu_custom_call.1} parent=1 // pred_check_branch
      %38 = sbr.rel (0) target = $region17
    $region16: #{tpu_custom_call.1} parent=1 // pred_region
      %39 = dma.done [#allocation3], 256
    $region17: #{tpu_custom_call.1} parent=1 // pred_fallthru
      _
    // Predicated region
    $region18: #{tpu_custom_call.1} parent=1 // pred_check
      _
    $region19: #{tpu_custom_call.1} parent=1 // pred_check_branch
      %41 = sbr.rel (0) target = $region21
    $region20: #{tpu_custom_call.1} parent=1 // pred_region
      %42 = dma.done [#allocation6], 512
    $region21: #{tpu_custom_call.1} parent=1 // pred_fallthru
      _
    %v43 = vld [vmem:[#allocation2] sm:$0xff]
    %v44 = vld [vmem:[#allocation2 + $0x8] sm:$0xff]
    %v45 = vld [vmem:[#allocation5] sm:$0xff]
    %v46 = vld [vmem:[#allocation5 + $0x8] sm:$0xff]
    %v47 = vld [vmem:[#allocation5 + $0x10] sm:$0xff]
    %v48 = vld [vmem:[#allocation5 + $0x18] sm:$0xff]
    %v49 = vld [vmem:[%s2] sm:$0x1]
    %v51 = vlaneseq
    %v52 = vshrl.u32 %v51, 7
    %v53 = vsub.s32 0, %v52
    %v54 = vrot.slane %v49, %v53
    %vm56 = vcmask 261120
    %v58 = vsel %vm56, %v43, 0
    %v61 = vsel %vm56, %v44, 0
    %v64 = vsel %vm56, %v45, 0
    %v67 = vsel %vm56, %v46, 0
    %v70 = vsel %vm56, %v47, 0
    %v73 = vsel %vm56, %v48, 0
    %75 = vmatprep.subr.mxu0 0.0
    %76 = vmatpush1.xpose.msra.mxu0 %v64
    %77 = vmatprep.subr.mxu0 0.0
    %78 = vmatpush1.xpose.msra.mxu0 %v67
    %79 = vmatprep.subr.mxu0 0.0
    %80 = vmatpush1.xpose.msra.mxu0 %v70
    %81 = vmatprep.subr.mxu0 0.0
    %82 = vmatpush1.xpose.msra.mxu0 %v73
    %83 = vmatprep.subr.mxu0 0.0
    %84 = vmatpush1.xpose.msra.mxu0 0.0
    %85 = vmatprep.subr.mxu0 0.0
    %86 = vmatpush1.xpose.msra.mxu0 0.0
    %87 = vmatprep.subr.mxu0 0.0
    %88 = vmatpush1.xpose.msra.mxu0 0.0
    %89 = vmatprep.subr.mxu0 0.0
    %90 = vmatpush1.xpose.msra.mxu0 0.0
    %91 = vmatprep.subr.mxu0 0.0
    %92 = vmatpush1.xpose.msra.mxu0 0.0
    %93 = vmatprep.subr.mxu0 0.0
    %94 = vmatpush1.xpose.msra.mxu0 0.0
    %95 = vmatprep.subr.mxu0 0.0
    %96 = vmatpush1.xpose.msra.mxu0 0.0
    %97 = vmatprep.subr.mxu0 0.0
    %98 = vmatpush1.xpose.msra.mxu0 0.0
    %99 = vmatprep.subr.mxu0 0.0
    %100 = vmatpush1.xpose.msra.mxu0 0.0
    %101 = vmatprep.subr.mxu0 0.0
    %102 = vmatpush1.xpose.msra.mxu0 0.0
    %103 = vmatprep.subr.mxu0 0.0
    %104 = vmatpush1.xpose.msra.mxu0 0.0
    %105 = vmatprep.subr.mxu0 0.0
    %106 = vmatpush1.xpose.msra.mxu0 0.0
    %107 = vmatprep.subr.mxu0 0.0
    %108 = vmatpush1.xpose.msra.mxu0 0.0
    %109 = vmatprep.subr.mxu0 0.0
    %110 = vmatpush1.xpose.msra.mxu0 0.0
    %111 = vmatprep.subr.mxu0 0.0
    %112 = vmatpush1.xpose.msra.mxu0 0.0
    %113 = vmatprep.subr.mxu0 0.0
    %114 = vmatpush1.xpose.msra.mxu0 0.0
    %115 = vmatprep.subr.mxu0 0.0
    %116 = vmatpush1.xpose.msra.mxu0 0.0
    %117 = vmatprep.subr.mxu0 0.0
    %118 = vmatpush1.xpose.msra.mxu0 0.0
    %119 = vmatprep.subr.mxu0 0.0
    %120 = vmatpush1.xpose.msra.mxu0 0.0
    %121 = vmatprep.subr.mxu0 0.0
    %122 = vmatpush1.xpose.msra.mxu0 0.0
    %123 = vmatprep.subr.mxu0 0.0
    %124 = vmatpush1.xpose.msra.mxu0 0.0
    %125 = vmatprep.subr.mxu0 0.0
    %126 = vmatpush1.xpose.msra.mxu0 0.0
    %127 = vmatprep.subr.mxu0 0.0
    %128 = vmatpush1.xpose.msra.mxu0 0.0
    %129 = vmatprep.subr.mxu0 0.0
    %130 = vmatpush1.xpose.msra.mxu0 0.0
    %131 = vmatprep.subr.mxu0 0.0
    %132 = vmatpush1.xpose.msra.mxu0 0.0
    %133 = vmatprep.subr.mxu0 0.0
    %134 = vmatpush1.xpose.msra.mxu0 0.0
    %135 = vmatprep.subr.mxu0 0.0
    %136 = vmatpush1.xpose.msra.mxu0 0.0
    %137 = vmatprep.subr.mxu0 0.0
    %138 = vmatpush1.xpose.msra.mxu0 0.0
    %139 = vmatprep.mubr.f32.mxu0 0.0
    %140 = vmatmul.mubr.f32.gmra.mrb[0].mxu0 %v58
    %v141 = vpop.f32.mrb[0].mxu0
    %v142 = vadd.f32 %v54, %v141
    %v143 = vpop.f32.mrb[0].mxu0
    %144 = vmatprep.mubr.f32.mxu0 0.0
    %145 = vmatmul.mubr.f32.gmra.mrb[0].mxu0 %v61
    %v146 = vpop.f32.mrb[0].mxu0
    %v147 = vadd.f32 %v54, %v146
    %v148 = vpop.f32.mrb[0].mxu0
    %149 = vdwg.mxu0
    %v150 = vsel %vm56, %v142, -inf
    %v151 = vrot.slane %v150, 4
    %v152 = vmax.f32 %v150, %v151
    %v153 = vrot.slane %v152, 2
    %v154 = vmax.f32 %v152, %v153
    %v155 = vrot.slane %v154, 1
    %v156 = vmax.f32 %v154, %v155
    %v157 = vsel %vm56, %v147, -inf
    %v158 = vrot.slane %v157, 4
    %v159 = vmax.f32 %v157, %v158
    %v160 = vrot.slane %v159, 2
    %v161 = vmax.f32 %v159, %v160
    %v162 = vrot.slane %v161, 1
    %v163 = vmax.f32 %v161, %v162
    %v164 = vsub.f32 %v142, %v156
    %v165 = vsub.f32 %v147, %v163
    %v166 = vmul.f32 %v164, 1.442695
    %v167 = vpow.pop %v166
    %v168 = vmul.f32 %v165, 1.442695
    %v169 = vpow.pop %v168
    %v170 = vsel %vm56, %v167, 0.0
    %v171 = vrot.slane %v170, 4
    %v172 = vadd.f32 %v170, %v171
    %v173 = vrot.slane %v172, 2
    %v174 = vadd.f32 %v172, %v173
    %v175 = vrot.slane %v174, 1
    %v176 = vadd.f32 %v174, %v175
    %v177 = vsel %vm56, %v169, 0.0
    %v178 = vrot.slane %v177, 4
    %v179 = vadd.f32 %v177, %v178
    %v180 = vrot.slane %v179, 2
    %v181 = vadd.f32 %v179, %v180
    %v182 = vrot.slane %v181, 1
    %v183 = vadd.f32 %v181, %v182
    %v184 = vmul.f32 %v43, %v167
    %v185 = vmul.f32 %v44, %v169
    %v186 = vsel %vm56, %v184, 0.0
    %v187 = vrot.slane %v186, 4
    %v188 = vadd.f32 %v186, %v187
    %v189 = vrot.slane %v188, 2
    %v190 = vadd.f32 %v188, %v189
    %v191 = vrot.slane %v190, 1
    %v192 = vadd.f32 %v190, %v191
    %v193 = vsel %vm56, %v185, 0.0
    %v194 = vrot.slane %v193, 4
    %v195 = vadd.f32 %v193, %v194
    %v196 = vrot.slane %v195, 2
    %v197 = vadd.f32 %v195, %v196
    %v198 = vrot.slane %v197, 1
    %v199 = vadd.f32 %v197, %v198
    %v200 = vrcp.pop %v176
    %v201 = vrcp.pop %v183
    %v202 = vmul.f32 %v192, %v200
    %v203 = vmul.f32 %v199, %v201
    %vm206 = vcmask 1041409
    %v207 = vsel %vm206, %v203, %v202
    %vm209 = vcmask 254976
    %210 = vst.msk [vmem:[#allocation7] sm:$0x3] %vm209, %v207
    // Predicated region
    $region22: #{tpu_custom_call.1} parent=1 // pred_check
      _
    $region23: #{tpu_custom_call.1} parent=1 // pred_check_branch
      %212 = sbr.rel (0) target = $region25
    $region24: #{tpu_custom_call.1} parent=1 // pred_region
      %s214 = ssub.s32 32, 32
      %215 = vsyncadd [#allocation4], %s214
      %s217 = sshll.u32 [#allocation7], 4
      %s218 = int_to_ptr.vmem [resolvable:$true] %s217
      %220 = dma.vmem_to_hbm [thread:$0]  %s218, 32, %s3, [#allocation4]
    $region25: #{tpu_custom_call.1} parent=1 // pred_fallthru
      _
    // Predicated region
    $region26: #{tpu_custom_call.1} parent=1 // pred_check
      _
    $region27: #{tpu_custom_call.1} parent=1 // pred_check_branch
      %222 = sbr.rel (0) target = $region29
    $region28: #{tpu_custom_call.1} parent=1 // pred_region
      %223 = dma.done [#allocation4], 32
    $region29: #{tpu_custom_call.1} parent=1 // pred_fallthru
      _
    %224 = vsyncpa [#allocation3], 1
    %225 = vsyncpa [#allocation6], 1
    %226 = vsyncpa [#allocation4], 1

</llo_original>
